<compile_context>
chip_gen: v6e
topology: v6e:2x2x1
jax: 0.10.0
libtpu: 0.0.40
codegen_flags: <defaults>
</compile_context>

<pallas_src>
import math

import jax
import jax.numpy as jnp
from jax.experimental import pallas as pl
from jax.experimental.pallas import tpu as pltpu


def _nt_kernel(x_ref, scale_ref, o_ref):
    # x_ref: (row_tile, col_tile); scale_ref: (1, col_tile) -> VPU broadcast multiply.
    # Multiply in the promoted dtype; store in the output dtype.
    o_ref[...] = (x_ref[...] * scale_ref[...]).astype(o_ref.dtype)


def _cdiv(a, b):
    return (a + b - 1) // b


def _round_up(a, b):
    return _cdiv(a, b) * b


def _choose_tiles(R, L, itemsize, pack):
    """Pick (row_tile, col_tile) targeting ~2 MiB per block."""
    target = 2 * 1024 * 1024  # per-block bytes; in+out double-buffered ~= 4x this

    # Column tile: keep the full lane dim unless even a minimal (pack-row) block would
    # blow the budget (only for very large 128-aligned input_dim).
    if L % 128 == 0 and pack * L * itemsize > target:
        col_tile = max(128, (target // (pack * itemsize) // 128) * 128)
    else:
        col_tile = L

    # Row tile from the remaining budget, rounded down to the sublane packing.
    row_tile = max(pack, target // max(col_tile * itemsize, 1))
    row_tile = max(pack, (row_tile // pack) * pack)

    # Keep at least 2 grid steps along rows when there is enough work so the v7x
    # megacore can shard the parallel axis across both TensorCores.
    if col_tile == L and R >= 2 * pack:
        row_tile = min(row_tile, _round_up(_cdiv(R, 2), pack))

    # If one block covers everything, shrink to the exact row count:
    # "block dim == full array dim" is always legal and avoids any masking.
    if row_tile >= R:
        row_tile = R
    return row_tile, col_tile


def neurotransmitter_forward(x, scale):
    """x: any shape (..., D); scale: (D,). Returns x * scale (PyTorch-promoted dtype)."""
    orig_shape = x.shape
    D = scale.shape[-1]
    assert orig_shape[-1] == D, "last dim of x must equal input_dim"

    out_dtype = jnp.result_type(x.dtype, scale.dtype)

    x2 = x.reshape(-1, D)
    rows = x2.shape[0]
    scale_row = scale.reshape(-1)

    # Lane-densify small / non-128-aligned input_dim by folding rows into lanes.
    if D % 128 != 0:
        k = 128 // math.gcd(D, 128)  # minimal k with (k*D) % 128 == 0
        if k > 1 and rows >= k and rows % k == 0:
            x2 = x2.reshape(rows // k, k * D)
            scale_row = jnp.tile(scale_row, k)
        # else: fall back to full-D blocks (correct, just masked partial stores)

    R, L = x2.shape
    scale2 = scale_row.reshape(1, L)

    itemsize = max(jnp.dtype(x.dtype).itemsize, jnp.dtype(out_dtype).itemsize)
    pack = max(8, 32 // jnp.dtype(x.dtype).itemsize)  # 8 f32 / 16 bf16 / 32 int8
    row_tile, col_tile = _choose_tiles(R, L, itemsize, pack)

    grid = (_cdiv(R, row_tile), _cdiv(L, col_tile))

    x_bytes = R * L * jnp.dtype(x.dtype).itemsize
    out_bytes = R * L * jnp.dtype(out_dtype).itemsize
    scale_bytes = L * jnp.dtype(scale.dtype).itemsize
    cost = pl.CostEstimate(
        flops=R * L,
        transcendentals=0,
        bytes_accessed=x_bytes + out_bytes + scale_bytes,
    )

    out = pl.pallas_call(
        _nt_kernel,
        out_shape=jax.ShapeDtypeStruct((R, L), out_dtype),
        grid_spec=pltpu.PrefetchScalarGridSpec(
            num_scalar_prefetch=0,
            grid=grid,
            in_specs=[
                pl.BlockSpec((row_tile, col_tile), lambda i, j: (i, j)),
                pl.BlockSpec((1, col_tile), lambda i, j: (0, j)),
            ],
            out_specs=pl.BlockSpec((row_tile, col_tile), lambda i, j: (i, j)),
        ),
        compiler_params=pltpu.CompilerParams(
            dimension_semantics=("parallel", "parallel"),
        ),
        cost_estimate=cost,
    )(x2, scale2)

    return out.reshape(orig_shape[:-1] + (D,))


if __name__ == "__main__":
    key = jax.random.PRNGKey(0)

    # Primary test: shapes implied by the module usage (batch=2, seq=8, hidden=32).
    batch, seq, hidden = 2, 8, 32
    x = jax.random.normal(key, (batch, seq, hidden), dtype=jnp.float32)
    # nn.Parameter(torch.ones(input_dim)), perturbed deterministically so the multiply is non-trivial.
    scale = jnp.ones((hidden,), dtype=jnp.float32) + 0.1 * jnp.arange(hidden, dtype=jnp.float32)

    y = jax.block_until_ready(neurotransmitter_forward(x, scale))
    ref = x * scale
    assert y.shape == x.shape and y.dtype == ref.dtype
    assert jnp.allclose(y, ref, atol=1e-6, rtol=1e-6)

    # 128-aligned D path (no lane folding, 2-step row grid, ragged last row block).
    x2 = jax.random.normal(jax.random.PRNGKey(1), (4, 37, 128), dtype=jnp.float32)
    s2 = 0.5 + 0.01 * jnp.arange(128, dtype=jnp.float32)
    y2 = jax.block_until_ready(neurotransmitter_forward(x2, s2))
    assert jnp.allclose(y2, x2 * s2, atol=1e-6, rtol=1e-6)

    # Non-foldable, non-128-aligned D path (single full-array block fallback).
    x3 = jax.random.normal(jax.random.PRNGKey(2), (3, 5, 48), dtype=jnp.float32)
    s3 = 1.0 + 0.05 * jnp.arange(48, dtype=jnp.float32)
    y3 = jax.block_until_ready(neurotransmitter_forward(x3, s3))
    assert jnp.allclose(y3, x3 * s3, atol=1e-6, rtol=1e-6)

    # Mixed-dtype promotion path (bf16 activations * f32 parameter -> f32, like PyTorch).
    x4 = jax.random.normal(jax.random.PRNGKey(3), (16, 32), dtype=jnp.bfloat16)
    y4 = jax.block_until_ready(neurotransmitter_forward(x4, scale))
    ref4 = x4.astype(jnp.float32) * scale
    assert y4.dtype == jnp.float32
    assert jnp.allclose(y4, ref4, atol=1e-2, rtol=1e-2)

    print("KERNEL_OK")
</pallas_src>

<mosaic_0001>
module attributes {stable_mosaic.version = 11 : i64} {
  func.func @_nt_kernel(%arg0: i32, %arg1: i32, %arg2: memref<4x128xf32, #tpu.memory_space<vmem>>, %arg3: memref<1x128xf32, #tpu.memory_space<vmem>>, %arg4: memref<4x128xf32, #tpu.memory_space<vmem>>) attributes {dimension_semantics = [#tpu.dimension_semantics<parallel>, #tpu.dimension_semantics<parallel>], iteration_bounds = array<i64: 1, 1>, scalar_prefetch = 0 : i64, scratch_operands = 0 : i64, tpu.core_type = #tpu.core_type<tc>, window_params = [{transform_indices = @transform_0, window_bounds = array<i64: 4, 128>}, {transform_indices = @transform_1, window_bounds = array<i64: 1, 128>}, {transform_indices = @transform_2, window_bounds = array<i64: 4, 128>}]} {
    %c0 = arith.constant 0 : index
    %c0_0 = arith.constant 0 : index
    %0 = vector.load %arg2[%c0, %c0_0] : memref<4x128xf32, #tpu.memory_space<vmem>>, vector<4x128xf32>
    %c0_1 = arith.constant 0 : index
    %c0_2 = arith.constant 0 : index
    %1 = vector.load %arg3[%c0_1, %c0_2] : memref<1x128xf32, #tpu.memory_space<vmem>>, vector<1x128xf32>
    %2 = vector.broadcast %1 : vector<1x128xf32> to vector<4x128xf32>
    %3 = arith.mulf %0, %2 : vector<4x128xf32>
    %c0_3 = arith.constant 0 : index
    %c0_4 = arith.constant 0 : index
    %4 = vector.load %arg4[%c0_3, %c0_4] : memref<4x128xf32, #tpu.memory_space<vmem>>, vector<4x128xf32>
    tpu.vector_store %arg4[%c0_3, %c0_4], %3 {strides = array<i32>} : memref<4x128xf32, #tpu.memory_space<vmem>>, vector<4x128xf32>,
    return
  }
  func.func @transform_0(%arg0: i32, %arg1: i32) -> (i32, i32) {
    %c0_i32 = arith.constant 0 : i32
    return %arg0, %arg1 : i32, i32
  }
  func.func @transform_1(%arg0: i32, %arg1: i32) -> (i32, i32) {
    %c0_i32 = arith.constant 0 : i32
    %c0_i32_0 = arith.constant 0 : i32
    return %c0_i32, %arg1 : i32, i32
  }
  func.func @transform_2(%arg0: i32, %arg1: i32) -> (i32, i32) {
    %c0_i32 = arith.constant 0 : i32
    return %arg0, %arg1 : i32, i32
  }
}

</mosaic_0001>

<llo_original>
// kernel: tpu_custom_call.1
$region0: #{tpu_custom_call.1}
  #allocation0 [shape = 'u32[]', space=smem, size = 0x4, offset = 0x4, fixed_abs, tag = 'smem constant byte address 0x4 - core index']
  #allocation1 [shape = 'u32[144,128]{1,0:T(1,128)}', space=vmem, size = 0x12000, scoped, tag = 'internal scratch']
  %s0 = inlined_call_operand.hbm [shape: f32[4,128], index: 0, kind: input, shape index: {}]
  %s1 = inlined_call_operand.vmem [shape: f32[1,128], index: 1, kind: input, shape index: {}]
  %s2 = inlined_call_operand.hbm [shape: f32[4,128], index: 2, kind: output, shape index: {}]
  %s3 = sld [smem:[#allocation0]]
  $region22: #{tpu_custom_call.1} parent=0
    _
  %s5 = ssub.s32 1, %s3
  %s6 = scalar_select 0, %s5, %s3
  $region1: #{tpu_custom_call.1} parent=0
    #allocation2 [shape = 'u8[2048]{0}', space=vmem, size = 0x800, scoped, tag = 'input window, operand 0, single buffered']
    #allocation3 [shape = 's32[1]{0}', space=sflag, size = 0x4, scoped, tag = 'scoped memory for tpu_custom_call.1']
    #allocation4 [shape = 's32[1]{0}', space=sflag, size = 0x4, scoped, tag = 'scoped memory for tpu_custom_call.1']
    #allocation5 [shape = 'u8[2048]{0}', space=vmem, size = 0x800, scoped, tag = 'output window, operand 0, single buffered']
    %7 = vsyncpa [#allocation3], 0
    %8 = vsyncpa [#allocation4], 0
    // Predicated region
    $region2: #{tpu_custom_call.1} parent=1 // pred_check
      _
    $region3: #{tpu_custom_call.1} parent=1 // pred_check_branch
      %10 = sbr.rel (0) target = $region5
    $region4: #{tpu_custom_call.1} parent=1 // pred_region
      %s12 = ssub.s32 64, 64
      %13 = vsyncadd [#allocation3], %s12
      %s15 = sshll.u32 [#allocation2], 4
      %s16 = int_to_ptr.vmem [resolvable:$true] %s15
      %18 = dma.hbm_to_vmem [thread:$0]  %s0, 64, %s16, [#allocation3]
    $region5: #{tpu_custom_call.1} parent=1 // pred_fallthru
      _
    // Predicated region
    $region6: #{tpu_custom_call.1} parent=1 // pred_check
      _
    $region7: #{tpu_custom_call.1} parent=1 // pred_check_branch
      %20 = sbr.rel (0) target = $region9
    $region8: #{tpu_custom_call.1} parent=1 // pred_region
      _
    $region9: #{tpu_custom_call.1} parent=1 // pred_fallthru
      _
    // Predicated region
    $region10: #{tpu_custom_call.1} parent=1 // pred_check
      _
    $region11: #{tpu_custom_call.1} parent=1 // pred_check_branch
      %22 = sbr.rel (0) target = $region13
    $region12: #{tpu_custom_call.1} parent=1 // pred_region
      %23 = dma.done [#allocation3], 64
    $region13: #{tpu_custom_call.1} parent=1 // pred_fallthru
      _
    %v24 = vld [vmem:[#allocation2] sm:$0xf]
    %v25 = vld [vmem:[%s1] sm:$0x1]
    %v27 = vlaneseq
    %v28 = vshrl.u32 %v27, 7
    %v29 = vsub.s32 0, %v28
    %v30 = vrot.slane %v25, %v29
    %v32 = vmul.f32 %v24, %v30
    %33 = vst [vmem:[#allocation5] sm:$0xf] %v32
    // Predicated region
    $region14: #{tpu_custom_call.1} parent=1 // pred_check
      _
    $region15: #{tpu_custom_call.1} parent=1 // pred_check_branch
      %35 = sbr.rel (0) target = $region17
    $region16: #{tpu_custom_call.1} parent=1 // pred_region
      %s37 = ssub.s32 64, 64
      %38 = vsyncadd [#allocation4], %s37
      %s40 = sshll.u32 [#allocation5], 4
      %s41 = int_to_ptr.vmem [resolvable:$true] %s40
      %43 = dma.vmem_to_hbm [thread:$0]  %s41, 64, %s2, [#allocation4]
    $region17: #{tpu_custom_call.1} parent=1 // pred_fallthru
      _
    // Predicated region
    $region18: #{tpu_custom_call.1} parent=1 // pred_check
      _
    $region19: #{tpu_custom_call.1} parent=1 // pred_check_branch
      %45 = sbr.rel (0) target = $region21
    $region20: #{tpu_custom_call.1} parent=1 // pred_region
      %46 = dma.done [#allocation4], 64
    $region21: #{tpu_custom_call.1} parent=1 // pred_fallthru
      _
    %47 = vsyncpa [#allocation3], 1
    %48 = vsyncpa [#allocation4], 1

</llo_original>
